<compile_context>
chip_gen: v7x
topology: tpu7x:2x2x1
jax: 0.10.0
libtpu: 0.0.40
codegen_flags: <defaults>
</compile_context>

<pallas_src>
import functools

import jax
import jax.numpy as jnp
from jax import lax
from jax.experimental import pallas as pl
from jax.experimental.pallas import tpu as pltpu


def cagp_kernel(w_ref, mask_ref, x_ref, o_ref, *, H, W, K):
    """Fused CAGP forward for one batch element.

    w_ref:    (2, 3)        SMEM   Conv1d weight[0]  (in_channel, tap)
    mask_ref: (max(4r,1), H*W) VMEM  precomputed box-filter edge masks
    x_ref:    (C, H*W)      VMEM   input feature map (spatial flattened)
    o_ref:    (C, H*W)      VMEM   output
    """
    C, HW = x_ref.shape
    r = (K - 1) // 2
    x = x_ref[...].astype(jnp.float32)                            # (C, HW)

    # ---- global average / max pooling per channel (lane reductions) --------
    avg = jnp.sum(x, axis=1, keepdims=True) * (1.0 / float(HW))   # (C, 1)
    mx = jnp.max(x, axis=1, keepdims=True)                        # (C, 1)

    # ---- Conv1d(2->1, kernel=3, pad=1) over channels: roll + 6 FMAs --------
    ch = lax.broadcasted_iota(jnp.int32, (C, 1), 0)
    ok_p = (ch < C - 1).astype(jnp.float32)     # channel c+1 exists
    ok_m = (ch >= 1).astype(jnp.float32)        # channel c-1 exists

    def shift_ch(v, d):
        # out[c] = v[c + d] with zero padding at the channel edges (|d| == 1).
        if d > 0:
            return pltpu.roll(v, shift=C - d, axis=0) * ok_p
        return pltpu.roll(v, shift=-d, axis=0) * ok_m

    y = (w_ref[0, 0] * shift_ch(avg, -1) + w_ref[0, 1] * avg
         + w_ref[0, 2] * shift_ch(avg, 1)
         + w_ref[1, 0] * shift_ch(mx, -1) + w_ref[1, 1] * mx
         + w_ref[1, 2] * shift_ch(mx, 1))                         # (C, 1)

    temp = 10.0 * jax.nn.sigmoid(50.0 * (jnp.abs(y) - 0.091))     # (C, 1)
    inv_t = pl.reciprocal(temp, approx=False)                     # (C, 1)

    # ---- softmax pooling ----------------------------------------------------
    xe = jnp.exp(x * inv_t)                                       # (C, HW), EUP

    # KxK zero-padded box sum of xe == AvgPool2d(K, 1, r) * K*K.
    # Separable shift-and-add over the flattened spatial axis using pltpu.roll
    # (XLU) and wrapper-precomputed edge masks (VPU multiplies). No MXU work.
    rowsum = xe
    for d in range(1, r + 1):                     # shifts along W
        mp = mask_ref[2 * (d - 1):2 * (d - 1) + 1, :]             # w+d valid
        mm = mask_ref[2 * (d - 1) + 1:2 * (d - 1) + 2, :]         # w-d valid
        rowsum = rowsum + pltpu.roll(xe, shift=HW - d, axis=1) * mp
        rowsum = rowsum + pltpu.roll(xe, shift=d, axis=1) * mm
    denom = rowsum
    base = 2 * r
    for d in range(1, r + 1):                     # shifts along H (by d*W)
        hp = mask_ref[base + 2 * (d - 1):base + 2 * (d - 1) + 1, :]
        hm = mask_ref[base + 2 * (d - 1) + 1:base + 2 * (d - 1) + 2, :]
        denom = denom + pltpu.roll(rowsum, shift=HW - d * W, axis=1) * hp
        denom = denom + pltpu.roll(rowsum, shift=d * W, axis=1) * hm

    weights = xe * pl.reciprocal(denom, approx=False)
    o_ref[...] = (weights * x).astype(o_ref.dtype)


def cagp_forward(x, conv_w, kernel_size=3, strides=1):
    """x: (B, C, H, W) float32; conv_w: (1, 2, 3) Conv1d weight (no bias)."""
    assert strides == 1, "CAGP only broadcasts correctly with AvgPool2d stride=1"
    assert kernel_size % 2 == 1, "kernel size must be odd"
    B, C, H, W = x.shape
    HW = H * W
    r = (kernel_size - 1) // 2

    x2 = x.reshape(B, C, HW)                       # free contiguous reshape
    wmat = jnp.asarray(conv_w, jnp.float32).reshape(2, 3)

    # Precompute the box-filter edge-validity masks once (constants; constant
    # index_map keeps them VMEM-resident instead of rebuilding iotas per step).
    cols = jnp.arange(HW, dtype=jnp.int32) % W
    rows = jnp.arange(HW, dtype=jnp.int32) // W
    mask_rows = []
    for d in range(1, r + 1):                      # W-direction shifts
        mask_rows.append(cols < (W - d))
        mask_rows.append(cols >= d)
    for d in range(1, r + 1):                      # H-direction shifts
        mask_rows.append(rows < (H - d))
        mask_rows.append(rows >= d)
    if not mask_rows:                              # kernel_size == 1 degenerate
        mask_rows.append(jnp.zeros((HW,), jnp.bool_))
    masks = jnp.stack(mask_rows, axis=0).astype(jnp.float32)  # (max(4r,1), HW)

    kern = functools.partial(cagp_kernel, H=H, W=W, K=kernel_size)
    out2 = pl.pallas_call(
        kern,
        out_shape=jax.ShapeDtypeStruct((B, C, HW), x.dtype),
        grid=(B,),
        in_specs=[
            pl.BlockSpec(memory_space=pltpu.MemorySpace.SMEM),       # conv weights
            pl.BlockSpec(masks.shape, lambda b: (0, 0)),             # const masks
            pl.BlockSpec((None, C, HW), lambda b: (b, 0, 0)),        # x per batch
        ],
        out_specs=pl.BlockSpec((None, C, HW), lambda b: (b, 0, 0)),
        compiler_params=pltpu.CompilerParams(
            dimension_semantics=("parallel",),        # megacore-shard batches (v7x)
            vmem_limit_bytes=32 * 1024 * 1024,
        ),
        # TODO(synk): for very large C*H*W feature maps (v7x 64 MiB VMEM), tile H
        # with per-channel avg/max accumulators instead of whole-image blocks.
    )(wmat, masks, x2)
    return out2.reshape(B, C, H, W)


def cagp_reference(x, conv_w, K):
    """Pure-JAX reference mirroring the PyTorch forward (stride=1)."""
    B, C, H, W = x.shape
    avg = jnp.mean(x, axis=(2, 3))                             # (B, C)
    mx = jnp.max(x, axis=(2, 3))                               # (B, C)
    inp = jnp.stack([avg, mx], axis=1)                         # (B, 2, C)
    inp_p = jnp.pad(inp, ((0, 0), (0, 0), (1, 1)))
    y = sum(conv_w[0, ic, k] * inp_p[:, ic, k:k + C]
            for ic in range(2) for k in range(3))              # (B, C)
    T = 10.0 * jax.nn.sigmoid(50.0 * (jnp.abs(y) - 0.091))
    T4 = T[:, :, None, None]
    xe = jnp.exp(x / T4)
    r = (K - 1) // 2
    xe_p = jnp.pad(xe, ((0, 0), (0, 0), (r, r), (r, r)))
    denom = sum(xe_p[:, :, i:i + H, j:j + W]
                for i in range(K) for j in range(K))           # KxK box sum
    return (xe / denom) * x


if __name__ == "__main__":
    key = jax.random.PRNGKey(0)
    kx, kw = jax.random.split(key)

    B, C, H, W = 2, 8, 16, 16
    kernel_size, strides = 3, 1

    x = jax.random.normal(kx, (B, C, H, W), dtype=jnp.float32)
    # Conv1d(2, 1, kernel_size=3, bias=False) weight, deterministic init.
    conv_w = jax.random.uniform(kw, (1, 2, 3), dtype=jnp.float32,
                                minval=-0.4, maxval=0.4)

    out = cagp_forward(x, conv_w, kernel_size=kernel_size, strides=strides)
    out = jax.block_until_ready(out)

    ref = cagp_reference(x, conv_w, kernel_size)
    assert out.shape == ref.shape
    assert bool(jnp.allclose(out, ref, rtol=1e-3, atol=1e-3)), (
        "mismatch vs reference: max abs diff = "
        f"{float(jnp.max(jnp.abs(out - ref)))}")

    print("KERNEL_OK")
</pallas_src>

<mosaic_0001>
module attributes {stable_mosaic.version = 11 : i64} {
  func.func @cagp_kernel(%arg0: i32, %arg1: memref<2x3xf32, #tpu.memory_space<smem>>, %arg2: memref<4x256xf32, #tpu.memory_space<vmem>>, %arg3: memref<1x8x256xf32, #tpu.memory_space<vmem>>, %arg4: memref<1x8x256xf32, #tpu.memory_space<vmem>>) attributes {dimension_semantics = [#tpu.dimension_semantics<parallel>], iteration_bounds = array<i64: 2>, scalar_prefetch = 0 : i64, scratch_operands = 0 : i64, tpu.core_type = #tpu.core_type<tc>, window_params = [{transform_indices = @transform_0, window_bounds = array<i64: 2, 3>}, {pipeline_mode = #tpu.pipeline_mode<synchronous>, transform_indices = @transform_1, window_bounds = array<i64: 4, 256>}, {transform_indices = @transform_2, window_bounds = array<i64: 1, 8, 256>}, {transform_indices = @transform_3, window_bounds = array<i64: 1, 8, 256>}]} {
    %c0 = arith.constant 0 : index
    %c0_0 = arith.constant 0 : index
    %c0_1 = arith.constant 0 : index
    %0 = vector.load %arg3[%c0, %c0_0, %c0_1] : memref<1x8x256xf32, #tpu.memory_space<vmem>>, vector<1x8x256xf32>
    %1 = vector.shape_cast %0 : vector<1x8x256xf32> to vector<8x256xf32>
    %cst = arith.constant dense<0.000000e+00> : vector<8xf32>
    %2 = vector.multi_reduction <add>, %1, %cst [1] : vector<8x256xf32> to vector<8xf32>
    %3 = vector.shape_cast %2 : vector<8xf32> to vector<8x1xf32>
    %cst_2 = arith.constant 3.906250e-03 : f32
    %4 = vector.broadcast %cst_2 : f32 to vector<8x1xf32>
    %5 = arith.mulf %3, %4 : vector<8x1xf32>
    %cst_3 = arith.constant dense<0xFF800000> : vector<8xf32>
    %6 = vector.multi_reduction <maximumf>, %1, %cst_3 [1] : vector<8x256xf32> to vector<8xf32>
    %7 = vector.shape_cast %6 : vector<8xf32> to vector<8x1xf32>
    %8 = tpu.iota {dimensions = array<i32: 0>} : vector<8x1xi32>
    %c7_i32 = arith.constant 7 : i32
    %9 = vector.broadcast %c7_i32 : i32 to vector<8x1xi32>
    %10 = arith.cmpi slt, %8, %9 : vector<8x1xi32>
    %11 = arith.extui %10 : vector<8x1xi1> to vector<8x1xi32>
    %12 = arith.sitofp %11 : vector<8x1xi32> to vector<8x1xf32>
    %c1_i32 = arith.constant 1 : i32
    %13 = vector.broadcast %c1_i32 : i32 to vector<8x1xi32>
    %14 = arith.cmpi sge, %8, %13 : vector<8x1xi32>
    %15 = arith.extui %14 : vector<8x1xi1> to vector<8x1xi32>
    %16 = arith.sitofp %15 : vector<8x1xi32> to vector<8x1xf32>
    %c0_4 = arith.constant 0 : index
    %c0_5 = arith.constant 0 : index
    %17 = memref.load %arg1[%c0_4, %c0_5] : memref<2x3xf32, #tpu.memory_space<smem>>
    %c1_i32_6 = arith.constant 1 : i32
    %18 = tpu.dynamic_rotate %5 by %c1_i32_6 dim 0 : vector<8x1xf32>, i32 -> vector<8x1xf32>
    %19 = arith.mulf %18, %16 : vector<8x1xf32>
    %20 = vector.broadcast %17 : f32 to vector<8x1xf32>
    %21 = arith.mulf %20, %19 : vector<8x1xf32>
    %c0_7 = arith.constant 0 : index
    %c1 = arith.constant 1 : index
    %22 = memref.load %arg1[%c0_7, %c1] : memref<2x3xf32, #tpu.memory_space<smem>>
    %23 = vector.broadcast %22 : f32 to vector<8x1xf32>
    %24 = arith.mulf %23, %5 : vector<8x1xf32>
    %25 = arith.addf %21, %24 : vector<8x1xf32>
    %c0_8 = arith.constant 0 : index
    %c2 = arith.constant 2 : index
    %26 = memref.load %arg1[%c0_8, %c2] : memref<2x3xf32, #tpu.memory_space<smem>>
    %c7_i32_9 = arith.constant 7 : i32
    %27 = tpu.dynamic_rotate %5 by %c7_i32_9 dim 0 : vector<8x1xf32>, i32 -> vector<8x1xf32>
    %28 = arith.mulf %27, %12 : vector<8x1xf32>
    %29 = vector.broadcast %26 : f32 to vector<8x1xf32>
    %30 = arith.mulf %29, %28 : vector<8x1xf32>
    %31 = arith.addf %25, %30 : vector<8x1xf32>
    %c1_10 = arith.constant 1 : index
    %c0_11 = arith.constant 0 : index
    %32 = memref.load %arg1[%c1_10, %c0_11] : memref<2x3xf32, #tpu.memory_space<smem>>
    %c1_i32_12 = arith.constant 1 : i32
    %33 = tpu.dynamic_rotate %7 by %c1_i32_12 dim 0 : vector<8x1xf32>, i32 -> vector<8x1xf32>
    %34 = arith.mulf %33, %16 : vector<8x1xf32>
    %35 = vector.broadcast %32 : f32 to vector<8x1xf32>
    %36 = arith.mulf %35, %34 : vector<8x1xf32>
    %37 = arith.addf %31, %36 : vector<8x1xf32>
    %c1_13 = arith.constant 1 : index
    %c1_14 = arith.constant 1 : index
    %38 = memref.load %arg1[%c1_13, %c1_14] : memref<2x3xf32, #tpu.memory_space<smem>>
    %39 = vector.broadcast %38 : f32 to vector<8x1xf32>
    %40 = arith.mulf %39, %7 : vector<8x1xf32>
    %41 = arith.addf %37, %40 : vector<8x1xf32>
    %c1_15 = arith.constant 1 : index
    %c2_16 = arith.constant 2 : index
    %42 = memref.load %arg1[%c1_15, %c2_16] : memref<2x3xf32, #tpu.memory_space<smem>>
    %c7_i32_17 = arith.constant 7 : i32
    %43 = tpu.dynamic_rotate %7 by %c7_i32_17 dim 0 : vector<8x1xf32>, i32 -> vector<8x1xf32>
    %44 = arith.mulf %43, %12 : vector<8x1xf32>
    %45 = vector.broadcast %42 : f32 to vector<8x1xf32>
    %46 = arith.mulf %45, %44 : vector<8x1xf32>
    %47 = arith.addf %41, %46 : vector<8x1xf32>
    %48 = math.absf %47 : vector<8x1xf32>
    %cst_18 = arith.constant 0.0909999981 : f32
    %49 = vector.broadcast %cst_18 : f32 to vector<8x1xf32>
    %50 = arith.subf %48, %49 : vector<8x1xf32>
    %cst_19 = arith.constant 5.000000e+01 : f32
    %51 = vector.broadcast %cst_19 : f32 to vector<8x1xf32>
    %52 = arith.mulf %51, %50 : vector<8x1xf32>
    %53 = arith.negf %52 : vector<8x1xf32>
    %54 = math.exp %53 : vector<8x1xf32>
    %cst_20 = arith.constant 1.000000e+00 : f32
    %55 = vector.broadcast %cst_20 : f32 to vector<8x1xf32>
    %56 = arith.addf %55, %54 : vector<8x1xf32>
    %57 = arith.divf %55, %56 : vector<8x1xf32>
    %cst_21 = arith.constant 1.000000e+01 : f32
    %58 = vector.broadcast %cst_21 : f32 to vector<8x1xf32>
    %59 = arith.mulf %58, %57 : vector<8x1xf32>
    %60 = tpu.reciprocal %59 : vector<8x1xf32> -> vector<8x1xf32>
    %61 = vector.broadcast %60 : vector<8x1xf32> to vector<8x256xf32>
    %62 = arith.mulf %1, %61 : vector<8x256xf32>
    %63 = math.exp %62 : vector<8x256xf32>
    %c0_22 = arith.constant 0 : index
    %c0_23 = arith.constant 0 : index
    %64 = vector.load %arg2[%c0_22, %c0_23] : memref<4x256xf32, #tpu.memory_space<vmem>>, vector<1x256xf32>
    %c1_24 = arith.constant 1 : index
    %c0_25 = arith.constant 0 : index
    %65 = vector.load %arg2[%c1_24, %c0_25] : memref<4x256xf32, #tpu.memory_space<vmem>>, vector<1x256xf32>
    %c255_i32 = arith.constant 255 : i32
    %66 = tpu.dynamic_rotate %63 by %c255_i32 dim 1 : vector<8x256xf32>, i32 -> vector<8x256xf32>
    %67 = vector.broadcast %64 : vector<1x256xf32> to vector<8x256xf32>
    %68 = arith.mulf %66, %67 : vector<8x256xf32>
    %69 = arith.addf %63, %68 : vector<8x256xf32>
    %c1_i32_26 = arith.constant 1 : i32
    %70 = tpu.dynamic_rotate %63 by %c1_i32_26 dim 1 : vector<8x256xf32>, i32 -> vector<8x256xf32>
    %71 = vector.broadcast %65 : vector<1x256xf32> to vector<8x256xf32>
    %72 = arith.mulf %70, %71 : vector<8x256xf32>
    %73 = arith.addf %69, %72 : vector<8x256xf32>
    %c2_27 = arith.constant 2 : index
    %c0_28 = arith.constant 0 : index
    %74 = vector.load %arg2[%c2_27, %c0_28] : memref<4x256xf32, #tpu.memory_space<vmem>>, vector<1x256xf32>
    %c3 = arith.constant 3 : index
    %c0_29 = arith.constant 0 : index
    %75 = vector.load %arg2[%c3, %c0_29] : memref<4x256xf32, #tpu.memory_space<vmem>>, vector<1x256xf32>
    %c240_i32 = arith.constant 240 : i32
    %76 = tpu.dynamic_rotate %73 by %c240_i32 dim 1 : vector<8x256xf32>, i32 -> vector<8x256xf32>
    %77 = vector.broadcast %74 : vector<1x256xf32> to vector<8x256xf32>
    %78 = arith.mulf %76, %77 : vector<8x256xf32>
    %79 = arith.addf %73, %78 : vector<8x256xf32>
    %c16_i32 = arith.constant 16 : i32
    %80 = tpu.dynamic_rotate %73 by %c16_i32 dim 1 : vector<8x256xf32>, i32 -> vector<8x256xf32>
    %81 = vector.broadcast %75 : vector<1x256xf32> to vector<8x256xf32>
    %82 = arith.mulf %80, %81 : vector<8x256xf32>
    %83 = arith.addf %79, %82 : vector<8x256xf32>
    %84 = tpu.reciprocal %83 : vector<8x256xf32> -> vector<8x256xf32>
    %85 = arith.mulf %63, %84 : vector<8x256xf32>
    %86 = arith.mulf %85, %1 : vector<8x256xf32>
    %c0_30 = arith.constant 0 : index
    %c0_31 = arith.constant 0 : index
    %c0_32 = arith.constant 0 : index
    %87 = vector.load %arg4[%c0_30, %c0_31, %c0_32] : memref<1x8x256xf32, #tpu.memory_space<vmem>>, vector<1x8x256xf32>
    %88 = vector.shape_cast %87 : vector<1x8x256xf32> to vector<8x256xf32>
    %89 = vector.shape_cast %86 : vector<8x256xf32> to vector<1x8x256xf32>
    tpu.vector_store %arg4[%c0_30, %c0_31, %c0_32], %89 {strides = array<i32>} : memref<1x8x256xf32, #tpu.memory_space<vmem>>, vector<1x8x256xf32>,
    return
  }
  func.func @transform_0(%arg0: i32) -> (i32, i32) {
    %c0_i32 = arith.constant 0 : i32
    %c0_i32_0 = arith.constant 0 : i32
    %c0_i32_1 = arith.constant 0 : i32
    return %c0_i32, %c0_i32_0 : i32, i32
  }
  func.func @transform_1(%arg0: i32) -> (i32, i32) {
    %c0_i32 = arith.constant 0 : i32
    %c0_i32_0 = arith.constant 0 : i32
    %c0_i32_1 = arith.constant 0 : i32
    return %c0_i32, %c0_i32_0 : i32, i32
  }
  func.func @transform_2(%arg0: i32) -> (i32, i32, i32) {
    %c0_i32 = arith.constant 0 : i32
    %c0_i32_0 = arith.constant 0 : i32
    %c0_i32_1 = arith.constant 0 : i32
    return %arg0, %c0_i32, %c0_i32_0 : i32, i32, i32
  }
  func.func @transform_3(%arg0: i32) -> (i32, i32, i32) {
    %c0_i32 = arith.constant 0 : i32
    %c0_i32_0 = arith.constant 0 : i32
    %c0_i32_1 = arith.constant 0 : i32
    return %arg0, %c0_i32, %c0_i32_0 : i32, i32, i32
  }
}

</mosaic_0001>

<llo_original>
// kernel: tpu_custom_call.1
$region0: #{tpu_custom_call.1}
  #allocation0 [shape = 'u32[]', space=smem, size = 0x4, offset = 0x4, fixed_abs, tag = 'smem constant byte address 0x4 - core index']
  #allocation1 [shape = 'u32[144,128]{1,0:T(1,128)}', space=vmem, size = 0x12000, scoped, tag = 'internal scratch']
  %s0 = inlined_call_operand.hbm [shape: f32[2,3], index: 0, kind: input, shape index: {}]
  %s1 = inlined_call_operand.hbm [shape: f32[4,256], index: 1, kind: input, shape index: {}]
  %s2 = inlined_call_operand.hbm [shape: f32[2,8,256], index: 2, kind: input, shape index: {}]
  %s3 = inlined_call_operand.hbm [shape: f32[2,8,256], index: 3, kind: output, shape index: {}]
  %s4 = sld [smem:[#allocation0]]
  $region57: #{tpu_custom_call.1} parent=0
    _
  %s6 = ssub.s32 1, %s4
  %s7 = scalar_select 0, %s6, %s4
  $region1: #{tpu_custom_call.1} parent=0
    #allocation2 [shape = 'u8[1024]{0}', space=smem, size = 0x400, scoped, tag = 'input window, operand 0, single buffered']
    #allocation3 [shape = 's32[2]{0}', space=sflag, size = 0x8, scoped, tag = 'scoped memory for tpu_custom_call.1']
    #allocation4 [shape = 's32[2]{0}', space=sflag, size = 0x8, scoped, tag = 'scoped memory for tpu_custom_call.1']
    #allocation5 [shape = 's32[2]{0}', space=sflag, size = 0x8, scoped, tag = 'scoped memory for tpu_custom_call.1']
    #allocation6 [shape = 'u8[4096]{0}', space=vmem, size = 0x1000, scoped, tag = 'input window, operand 1, single buffered']
    #allocation7 [shape = 'u8[16384]{0}', space=vmem, size = 0x4000, scoped, tag = 'input window, operand 2']
    #allocation8 [shape = 's32[2]{0}', space=sflag, size = 0x8, scoped, tag = 'scoped memory for tpu_custom_call.1']
    #allocation9 [shape = 'u8[16384]{0}', space=vmem, size = 0x4000, scoped, tag = 'output window, operand 0']
    %8 = vsyncpa [#allocation5], 0
    %9 = vsyncpa [#allocation3], 0
    %10 = vsyncpa [#allocation8], 0
    %s11 = scalar_lea.sflag [#allocation8], 1
    %12 = vsyncpa %s11, 0
    %13 = vsyncpa [#allocation4], 0
    %s14 = scalar_lea.sflag [#allocation4], 1
    %15 = vsyncpa %s14, 0
    loop: start=0, step=1, limit=4
    $region2: #{tpu_custom_call.1} parent=1 // loop_pre_header
      _
    $region3: #{tpu_custom_call.1} parent=1 // loop_header
      %s17 = sphi 0, %s21
      %p18 = scmp.ge.s32.totalorder %s17, 4
      %s25 = sphi 0, %s25
      %s27 = sphi 0, %s25
      %s28 = sphi 0, %s27
      %s42 = sphi 0, %s28
      %s46 = sphi 0, %s46
      %s48 = sphi 0, %s46
      %s49 = sphi 0, %s48
      %s63 = sphi 0, %s49
      %s69 = sphi 0, %s71
      %s72 = sphi 0, %s69
      %s73 = sphi 0, %s72
      %s89 = sphi 0, %s73
      %s95 = sphi 0, %s97
      %s98 = sphi 0, %s95
      %s99 = sphi 0, %s98
      %s115 = sphi 0, %s99
    $region4: #{tpu_custom_call.1} parent=1 // loop_header_branch
      %20 = sbr.rel (%p18) target = $region8
    $region5: #{tpu_custom_call.1} parent=1 // loop_body
      %s22 = ssub.s32 %s17, 1
      %s23 = ssub.s32 %s17, 2
      %s24 = sadd.s32 %s17, 1
      %s26 = sadd.s32 %s25, 1
      %p29 = scmp.eq.s32.totalorder %s17, 1
      %p30 = scmp.ne.s32.totalorder %s25, %s27
      %p31 = scmp.eq.s32.totalorder %s17, 0
      %p32 = por %p30, %p31
      %p33 = scmp.ne.s32.totalorder %s25, %s27
      %p34 = scmp.eq.s32.totalorder %s22, 1
      %p35 = por %p33, %p34
      %p36 = scmp.ne.s32.totalorder %s27, %s28
      %p37 = scmp.eq.s32.totalorder %s22, 0
      %p38 = por %p36, %p37
      %p39 = scmp.ne.s32.totalorder %s27, %s28
      %p40 = scmp.eq.s32.totalorder %s23, 1
      %p41 = por %p39, %p40
      %p43 = scmp.ne.s32.totalorder %s28, %s42
      %p44 = scmp.eq.s32.totalorder %s23, 0
      %p45 = por %p43, %p44
      %s47 = sadd.s32 %s46, 1
      %p50 = scmp.eq.s32.totalorder %s17, 1
      %p51 = scmp.ne.s32.totalorder %s46, %s48
      %p52 = scmp.eq.s32.totalorder %s17, 0
      %p53 = por %p51, %p52
      %p54 = scmp.ne.s32.totalorder %s46, %s48
      %p55 = scmp.eq.s32.totalorder %s22, 1
      %p56 = por %p54, %p55
      %p57 = scmp.ne.s32.totalorder %s48, %s49
      %p58 = scmp.eq.s32.totalorder %s22, 0
      %p59 = por %p57, %p58
      %p60 = scmp.ne.s32.totalorder %s48, %s49
      %p61 = scmp.eq.s32.totalorder %s23, 1
      %p62 = por %p60, %p61
      %p64 = scmp.ne.s32.totalorder %s49, %s63
      %p65 = scmp.eq.s32.totalorder %s23, 0
      %p66 = por %p64, %p65
      %s67 = ssub.s32 %s17, %s24
      %p68 = scmp.eq.s32.totalorder %s67, 0
      %s70 = sadd.s32 %s69, 1
      %s71 = scalar_select %p68, %s69, %s70
      %p74 = pneg %p68
      %p75 = scmp.eq.s32.totalorder %s17, 1
      %p76 = por %p74, %p75
      %p77 = scmp.ne.s32.totalorder %s69, %s72
      %p78 = scmp.eq.s32.totalorder %s17, 0
      %p79 = por %p77, %p78
      %p80 = scmp.ne.s32.totalorder %s69, %s72
      %p81 = scmp.eq.s32.totalorder %s22, 1
      %p82 = por %p80, %p81
      %p83 = scmp.ne.s32.totalorder %s72, %s73
      %p84 = scmp.eq.s32.totalorder %s22, 0
      %p85 = por %p83, %p84
      %p86 = scmp.ne.s32.totalorder %s72, %s73
      %p87 = scmp.eq.s32.totalorder %s23, 1
      %p88 = por %p86, %p87
      %p90 = scmp.ne.s32.totalorder %s73, %s89
      %p91 = scmp.eq.s32.totalorder %s23, 0
      %p92 = por %p90, %p91
      %s93 = ssub.s32 %s17, %s24
      %p94 = scmp.eq.s32.totalorder %s93, 0
      %s96 = sadd.s32 %s95, 1
      %s97 = scalar_select %p94, %s95, %s96
      %p100 = pneg %p94
      %p101 = scmp.eq.s32.totalorder %s17, 1
      %p102 = por %p100, %p101
      %p103 = scmp.ne.s32.totalorder %s95, %s98
      %p104 = scmp.eq.s32.totalorder %s17, 0
      %p105 = por %p103, %p104
      %p106 = scmp.ne.s32.totalorder %s95, %s98
      %p107 = scmp.eq.s32.totalorder %s22, 1
      %p108 = por %p106, %p107
      %p109 = scmp.ne.s32.totalorder %s98, %s99
      %p110 = scmp.eq.s32.totalorder %s22, 0
      %p111 = por %p109, %p110
      %p112 = scmp.ne.s32.totalorder %s98, %s99
      %p113 = scmp.eq.s32.totalorder %s23, 1
      %p114 = por %p112, %p113
      %p116 = scmp.ne.s32.totalorder %s99, %s115
      %p117 = scmp.eq.s32.totalorder %s23, 0
      %p118 = por %p116, %p117
      %p119 = scmp.le.s32.totalorder 1, %s17
      %p120 = scmp.lt.s32.totalorder %s17, 3
      %p121 = pnand %p119, %p120
      %p122 = pneg %p121
      // Predicated region
      $region9: #{tpu_custom_call.1} parent=5 // pred_check
        _
      $region10: #{tpu_custom_call.1} parent=5 // pred_check_branch
        %124 = sbr.rel (%p121) target = $region12
      $region11: #{tpu_custom_call.1} parent=5 // pred_region
        %s125 = ssub.s32 %s17, 1
        // Predicated region
        $region13: #{tpu_custom_call.1} parent=11 // pred_check
          %p126 = pneg %p38
        $region14: #{tpu_custom_call.1} parent=11 // pred_check_branch
          %128 = sbr.rel (%p126) target = $region16
        $region15: #{tpu_custom_call.1} parent=11 // pred_region
          %s130 = ssub.s32 32, 32
          %131 = vsyncadd [#allocation5], %s130
          %134 = dma.hbm_to_smem %s0, 32, [#allocation2], [#allocation5]
        $region16: #{tpu_custom_call.1} parent=11 // pred_fallthru
          _
        // Predicated region
        $region17: #{tpu_custom_call.1} parent=11 // pred_check
          %p135 = pneg %p59
        $region18: #{tpu_custom_call.1} parent=11 // pred_check_branch
          %137 = sbr.rel (%p135) target = $region20
        $region19: #{tpu_custom_call.1} parent=11 // pred_region
          %s139 = ssub.s32 128, 128
          %140 = vsyncadd [#allocation3], %s139
          %s142 = sshll.u32 [#allocation6], 4
          %s143 = int_to_ptr.vmem [resolvable:$true] %s142
          %145 = dma.hbm_to_vmem [thread:$0]  %s1, 128, %s143, [#allocation3]
        $region20: #{tpu_custom_call.1} parent=11 // pred_fallthru
          _
      $region12: #{tpu_custom_call.1} parent=5 // pred_fallthru
        _
      %p146 = scmp.lt.s32.totalorder %s17, 2
      // Predicated region
      $region21: #{tpu_custom_call.1} parent=5 // pred_check
        %p147 = pneg %p146
      $region22: #{tpu_custom_call.1} parent=5 // pred_check_branch
        %149 = sbr.rel (%p147) target = $region24
      $region23: #{tpu_custom_call.1} parent=5 // pred_region
        // Predicated region
        $region25: #{tpu_custom_call.1} parent=23 // pred_check
          %p150 = pneg %p79
        $region26: #{tpu_custom_call.1} parent=23 // pred_check_branch
          %152 = sbr.rel (%p150) target = $region28
        $region27: #{tpu_custom_call.1} parent=23 // pred_region
          %s153 = sand.u32 %s69, 1
          %s154 = scalar_lea.sflag [#allocation8], %s153
          %s155 = sand.u32 %s69, 1
          %s156 = smul.addr %s155, 16
          %s157 = scalar_lea.vmem [#allocation7], %s156
          %s159 = ssub.s32 256, 256
          %160 = vsyncadd %s154, %s159
          %s161 = smul.addr %s17, 2
          %s162 = smul.addr %s161, 128
          %s163 = scalar_lea.hbm %s2, %s162
          %s165 = sshll.u32 %s157, 4
          %s166 = int_to_ptr.vmem [resolvable:$true] %s165
          %168 = dma.hbm_to_vmem [thread:$0]  %s163, 256, %s166, %s154
        $region28: #{tpu_custom_call.1} parent=23 // pred_fallthru
          _
      $region24: #{tpu_custom_call.1} parent=5 // pred_fallthru
        _
      %p169 = scmp.le.s32.totalorder 1, %s17
      %p170 = scmp.lt.s32.totalorder %s17, 3
      %p171 = pnand %p169, %p170
      %p172 = pneg %p171
      // Predicated region
      $region29: #{tpu_custom_call.1} parent=5 // pred_check
        _
      $region30: #{tpu_custom_call.1} parent=5 // pred_check_branch
        %174 = sbr.rel (%p171) target = $region32
      $region31: #{tpu_custom_call.1} parent=5 // pred_region
        %s175 = ssub.s32 %s17, 1
        // Predicated region
        $region33: #{tpu_custom_call.1} parent=31 // pred_check
          %p176 = pneg %p38
        $region34: #{tpu_custom_call.1} parent=31 // pred_check_branch
          %178 = sbr.rel (%p176) target = $region36
        $region35: #{tpu_custom_call.1} parent=31 // pred_region
          %179 = dma.done [#allocation5], 32
        $region36: #{tpu_custom_call.1} parent=31 // pred_fallthru
          _
        // Predicated region
        $region37: #{tpu_custom_call.1} parent=31 // pred_check
          %p180 = pneg %p59
        $region38: #{tpu_custom_call.1} parent=31 // pred_check_branch
          %182 = sbr.rel (%p180) target = $region40
        $region39: #{tpu_custom_call.1} parent=31 // pred_region
          %183 = dma.done [#allocation3], 128
        $region40: #{tpu_custom_call.1} parent=31 // pred_fallthru
          _
        %s184 = sand.u32 %s72, 1
        %s185 = scalar_lea.sflag [#allocation8], %s184
        %s186 = sand.u32 %s72, 1
        %s187 = smul.addr %s186, 16
        %s188 = scalar_lea.vmem [#allocation7], %s187
        // Predicated region
        $region41: #{tpu_custom_call.1} parent=31 // pred_check
          %p189 = pneg %p85
        $region42: #{tpu_custom_call.1} parent=31 // pred_check_branch
          %191 = sbr.rel (%p189) target = $region44
        $region43: #{tpu_custom_call.1} parent=31 // pred_region
          %192 = dma.done %s185, 256
        $region44: #{tpu_custom_call.1} parent=31 // pred_fallthru
          _
        %193 = sfence
        %p194 = pneg %p38
        %p195 = pneg %p35
        %p196 = pneg %p59
        %p197 = pneg %p56
        %s198 = sand.u32 %s72, 1
        %s199 = scalar_lea.sflag [#allocation8], %s198
        %s200 = sand.u32 %s72, 1
        %s201 = smul.addr %s200, 16
        %s202 = scalar_lea.vmem [#allocation7], %s201
        %p203 = pneg %p85
        %p204 = pneg %p82
        %p205 = pneg %p111
        %p206 = pneg %p108
        %s207 = sand.u32 %s98, 1
        %s208 = scalar_lea.sflag [#allocation4], %s207
        %s209 = sand.u32 %s98, 1
        %s210 = smul.addr %s209, 16
        %s211 = scalar_lea.vmem [#allocation9], %s210
        %v212 = vld [vmem:[%s188] sm:$0xff]
        %v213 = vld [vmem:[%s188 + $0x8] sm:$0xff]
        %v214 = vadd.f32 %v212, %v213
        %215 = vadd.xlane.f32.xlu0 %v214
        %v216 = vpop.xlane.xlu0 %215
        %v217 = vmul.f32 %v216, 0.00390625
        %v218 = vmax.f32 %v212, %v213
        %219 = vmax.xlane.f32.xlu0 %v218
        %v220 = vpop.xlane.xlu0 %219
        %v221 = vlaneseq
        %v222 = vshrl.u32 %v221, 7
        %vm223 = vcmp.lt.s32.totalorder %v222, 7
        %v224 = vsel %vm223, 1, 0
        %v225 = vcvt.s32.f32 %v224
        %vm226 = vcmp.ge.s32.totalorder %v222, 1
        %v227 = vsel %vm226, 1, 0
        %v228 = vcvt.s32.f32 %v227
        %s229 = sld [smem:[#allocation2]]
        %v230 = vrot.slane %v217, 7
        %v231 = vmul.f32 %v230, %v228
        %v232 = vstv %s229
        %v233 = vmul.f32 %v232, %v231
        %s234 = sld [smem:[#allocation2 + $0x1]]
        %v235 = vstv %s234
        %v236 = vmul.f32 %v235, %v217
        %v237 = vadd.f32 %v233, %v236
        %s238 = sld [smem:[#allocation2 + $0x2]]
        %v239 = vrot.slane %v217, 1
        %v240 = vmul.f32 %v239, %v225
        %v241 = vstv %s238
        %v242 = vmul.f32 %v241, %v240
        %v243 = vadd.f32 %v237, %v242
        %s244 = sld [smem:[#allocation2 + $0x80]]
        %v245 = vrot.slane %v220, 7
        %v246 = vmul.f32 %v245, %v228
        %v247 = vstv %s244
        %v248 = vmul.f32 %v247, %v246
        %v249 = vadd.f32 %v243, %v248
        %s250 = sld [smem:[#allocation2 + $0x81]]
        %v251 = vstv %s250
        %v252 = vmul.f32 %v251, %v220
        %v253 = vadd.f32 %v249, %v252
        %s254 = sld [smem:[#allocation2 + $0x82]]
        %v255 = vrot.slane %v220, 1
        %v256 = vmul.f32 %v255, %v225
        %v257 = vstv %s254
        %v258 = vmul.f32 %v257, %v256
        %v259 = vadd.f32 %v253, %v258
        %v260 = vand.u32 2147483647, %v259
        %v261 = vsub.f32 %v260, 0.091
        %v262 = vmul.f32 %v261, 50.0
        %v263 = vxor.u32 %v262, 2147483648
        %v264 = vmul.f32 %v263, 1.442695
        %v265 = vpow.pop %v264
        %v266 = vadd.f32 %v265, 1.0
        %v267 = vrcp.pop %v266
        %v268 = vmul.f32 1.0, %v267
        %v269 = vmul.f32 %v268, 10.0
        %v270 = vrcp.pop %v269
        %272 = vset.pattern.permute.xlu0 0
        %273 = vperm.xlu0 %272, %v270
        %v274 = vpop.permute.xlu0 %273
        %v276 = vmul.f32 %v212, %v274
        %v277 = vmul.f32 %v213, %v274
        %v278 = vmul.f32 %v276, 1.442695
        %v279 = vpow.pop %v278
        %v280 = vmul.f32 %v277, 1.442695
        %v281 = vpow.pop %v280
        %v282 = vld [vmem:[#allocation6] ss:$4 sm:$0x3]
        %s283 = scalar_lea.vmem [#allocation6], 1
        %v284 = vld [vmem:[%s283] ss:$4 sm:$0x3]
        %285 = vrot.lane.b32.xlu0 %v279, 127
        %v286 = vpop.permute.xlu0 %285
        %287 = vrot.lane.b32.xlu0 %v281, 127
        %v288 = vpop.permute.xlu0 %287
        %v289 = vlaneseq
        %v290 = vand.u32 %v289, 127
        %vm291 = vcmp.lt.s32.totalorder %v290, 127
        %v292 = vsel %vm291, %v286, %v288
        %v293 = vsel %vm291, %v288, %v286
        %v295 = vlaneseq
        %v296 = vshrl.u32 %v295, 7
        %v297 = vsub.s32 0, %v296
        %v298 = vrot.slane %v282, %v297
        %v299 = vlaneseq
        %v300 = vshrl.u32 %v299, 7
        %v301 = vsub.s32 1, %v300
        %v302 = vrot.slane %v282, %v301
        %v305 = vmul.f32 %v292, %v298
        %v306 = vmul.f32 %v293, %v302
        %v307 = vadd.f32 %v279, %v305
        %v308 = vadd.f32 %v281, %v306
        %309 = vrot.lane.b32.xlu0 %v279, 1
        %v310 = vpop.permute.xlu0 %309
        %311 = vrot.lane.b32.xlu0 %v281, 1
        %v312 = vpop.permute.xlu0 %311
        %vm313 = vcmp.lt.s32.totalorder %v290, 1
        %v314 = vsel %vm313, %v310, %v312
        %v315 = vsel %vm313, %v312, %v310
        %v317 = vlaneseq
        %v318 = vshrl.u32 %v317, 7
        %v319 = vsub.s32 0, %v318
        %v320 = vrot.slane %v284, %v319
        %v321 = vlaneseq
        %v322 = vshrl.u32 %v321, 7
        %v323 = vsub.s32 1, %v322
        %v324 = vrot.slane %v284, %v323
        %v327 = vmul.f32 %v315, %v320
        %v328 = vmul.f32 %v314, %v324
        %v329 = vadd.f32 %v307, %v327
        %v330 = vadd.f32 %v308, %v328
        %s331 = scalar_lea.vmem [#allocation6], 2
        %v332 = vld [vmem:[%s331] ss:$4 sm:$0x3]
        %s333 = scalar_lea.vmem [#allocation6], 3
        %v334 = vld [vmem:[%s333] ss:$4 sm:$0x3]
        %335 = vrot.lane.b32.xlu0 %v329, 112
        %v336 = vpop.permute.xlu0 %335
        %337 = vrot.lane.b32.xlu0 %v330, 112
        %v338 = vpop.permute.xlu0 %337
        %vm339 = vcmp.lt.s32.totalorder %v290, 112
        %v340 = vsel %vm339, %v336, %v338
        %v341 = vsel %vm339, %v338, %v336
        %v343 = vlaneseq
        %v344 = vshrl.u32 %v343, 7
        %v345 = vsub.s32 0, %v344
        %v346 = vrot.slane %v332, %v345
        %v347 = vlaneseq
        %v348 = vshrl.u32 %v347, 7
        %v349 = vsub.s32 1, %v348
        %v350 = vrot.slane %v332, %v349
        %v353 = vmul.f32 %v340, %v346
        %v354 = vmul.f32 %v341, %v350
        %v355 = vadd.f32 %v329, %v353
        %v356 = vadd.f32 %v330, %v354
        %357 = vrot.lane.b32.xlu0 %v329, 16
        %v358 = vpop.permute.xlu0 %357
        %359 = vrot.lane.b32.xlu0 %v330, 16
        %v360 = vpop.permute.xlu0 %359
        %vm361 = vcmp.lt.s32.totalorder %v290, 16
        %v362 = vsel %vm361, %v358, %v360
        %v363 = vsel %vm361, %v360, %v358
        %v365 = vlaneseq
        %v366 = vshrl.u32 %v365, 7
        %v367 = vsub.s32 0, %v366
        %v368 = vrot.slane %v334, %v367
        %v369 = vlaneseq
        %v370 = vshrl.u32 %v369, 7
        %v371 = vsub.s32 1, %v370
        %v372 = vrot.slane %v334, %v371
        %v375 = vmul.f32 %v363, %v368
        %v376 = vmul.f32 %v362, %v372
        %v377 = vadd.f32 %v355, %v375
        %v378 = vadd.f32 %v356, %v376
        %v379 = vrcp.pop %v377
        %v380 = vrcp.pop %v378
        %v381 = vmul.f32 %v279, %v379
        %v382 = vmul.f32 %v281, %v380
        %v383 = vmul.f32 %v381, %v212
        %v384 = vmul.f32 %v382, %v213
        %385 = vst [vmem:[%s211] sm:$0xff] %v383
        %386 = vst [vmem:[%s211 + $0x8] sm:$0xff] %v384
        %s387 = sand.u32 %s98, 1
        %s388 = scalar_lea.sflag [#allocation4], %s387
        %s389 = sand.u32 %s98, 1
        %s390 = smul.addr %s389, 16
        %s391 = scalar_lea.vmem [#allocation9], %s390
        // Predicated region
        $region45: #{tpu_custom_call.1} parent=31 // pred_check
          %p392 = pneg %p108
        $region46: #{tpu_custom_call.1} parent=31 // pred_check_branch
          %394 = sbr.rel (%p392) target = $region48
        $region47: #{tpu_custom_call.1} parent=31 // pred_region
          %s396 = ssub.s32 256, 256
          %397 = vsyncadd %s388, %s396
          %s398 = smul.addr %s22, 2
          %s399 = smul.addr %s398, 128
          %s400 = scalar_lea.hbm %s3, %s399
          %s402 = sshll.u32 %s391, 4
          %s403 = int_to_ptr.vmem [resolvable:$true] %s402
          %405 = dma.vmem_to_hbm [thread:$0]  %s403, 256, %s400, %s388
        $region48: #{tpu_custom_call.1} parent=31 // pred_fallthru
          _
      $region32: #{tpu_custom_call.1} parent=5 // pred_fallthru
        _
      %p406 = scmp.le.s32.totalorder 2, %s17
      // Predicated region
      $region49: #{tpu_custom_call.1} parent=5 // pred_check
        %p407 = pneg %p406
      $region50: #{tpu_custom_call.1} parent=5 // pred_check_branch
        %409 = sbr.rel (%p407) target = $region52
      $region51: #{tpu_custom_call.1} parent=5 // pred_region
        %s410 = ssub.s32 %s17, 2
        // Predicated region
        $region53: #{tpu_custom_call.1} parent=51 // pred_check
          %p411 = pneg %p114
        $region54: #{tpu_custom_call.1} parent=51 // pred_check_branch
          %413 = sbr.rel (%p411) target = $region56
        $region55: #{tpu_custom_call.1} parent=51 // pred_region
          %s414 = sand.u32 %s99, 1
          %s415 = scalar_lea.sflag [#allocation4], %s414
          %s416 = sand.u32 %s99, 1
          %s417 = smul.addr %s416, 16
          %s418 = scalar_lea.vmem [#allocation9], %s417
          %419 = dma.done %s415, 256
        $region56: #{tpu_custom_call.1} parent=51 // pred_fallthru
          _
      $region52: #{tpu_custom_call.1} parent=5 // pred_fallthru
        _
    $region6: #{tpu_custom_call.1} parent=1 // loop_footer
      %s21 = sadd.s32 1, %s17
    $region7: #{tpu_custom_call.1} parent=1 // loop_footer_branch
      %16 = sbr.rel target = $region3
    $region8: #{tpu_custom_call.1} parent=1 // loop_exit
      _
    %420 = vsyncpa [#allocation3], 1
    %s421 = scalar_lea.sflag [#allocation3], 1
    %422 = vsyncpa %s421, 1
    %423 = vsyncpa [#allocation8], 1
    %s424 = scalar_lea.sflag [#allocation8], 1
    %425 = vsyncpa %s424, 1
    %426 = vsyncpa [#allocation4], 1
    %s427 = scalar_lea.sflag [#allocation4], 1
    %428 = vsyncpa %s427, 1
    %429 = vsyncpa [#allocation5], 1
    %s430 = scalar_lea.sflag [#allocation5], 1
    %431 = vsyncpa %s430, 1

</llo_original>
